<compile_context>
chip_gen: v7x
topology: tpu7x:2x2x1
jax: 0.10.0
libtpu: 0.0.40
codegen_flags: <defaults>
</compile_context>

<pallas_src>
import math
from functools import partial

import jax
import jax.numpy as jnp
from jax import lax
from jax.experimental import pallas as pl
from jax.experimental.pallas import tpu as pltpu

# ---- KMCL_Loss default hyper-parameters ----
GAMMA_NEG = 4.0
GAMMA_POS = 1.0
CLIP = 0.05
EPS = 1e-7
TEMP = 0.17
# Same machine-epsilon trick as the reference (math.sqrt runs in float64 there too).
EPS2 = math.sqrt(7.0 / 3 - 4.0 / 3 - 1)
TINY = 1.17549e-38
LANE = 128
_PAD_LOGIT = -100.0   # sigmoid(-100) == 0 exactly in f32 -> padded rows/classes are inert


def _ipow(x, n):
    """x**n for a static integer n >= 0 via repeated squaring (VPU multiplies only)."""
    if n <= 0:
        return jnp.ones_like(x)
    acc = None
    base = x
    while n:
        if n & 1:
            acc = base if acc is None else acc * base
        n >>= 1
        if n:
            base = base * base
    return acc


def _static_pow(x, g):
    """x**g for static g >= 0 (integer g avoids exp/log and matches torch.pow at x == 0)."""
    gi = int(g)
    if float(gi) == float(g):
        return _ipow(x, gi)
    logx = jnp.log(jnp.maximum(x, TINY))
    return jnp.where(x > 0.0, jnp.exp(g * logx), 0.0)


def _kmcl_kernel(feat_ref, x_ref, mu_ref, sd_ref, y_ref, colsum_ref, rowsum_ref,
                 out_ref, *, m_true, b_true, bj):
    bi, cp = x_ref.shape
    b_pad = y_ref.shape[0]
    m_f = float(m_true)
    inv_temp = 1.0 / TEMP

    i_raw = pl.program_id(0) * bi
    i_hint = pl.multiple_of(i_raw, bi)
    # i-block rows sliced from the resident full-batch refs (no duplicate per-step DMAs).
    mu_i = mu_ref[pl.ds(i_hint, bi), :]          # (bi, cp)
    sd_i = sd_ref[pl.ds(i_hint, bi), :]          # (bi, cp)  sd = sqrt(var)+eps (hoisted)
    y_i = y_ref[pl.ds(i_hint, bi), :]            # (bi, cp)  binary targets (i-block)
    x = x_ref[...]                               # (bi, cp)  logits ('pi')
    feat = feat_ref[...]                         # (bi, mp)  zero-padded feature rows

    row_id = lax.broadcasted_iota(jnp.int32, (bi, 1), 0) + i_raw
    rvb = row_id < b_true                        # padded batch rows are inert

    # ================= ASL loss =================
    x_sigmoid = 1.0 / (1.0 + jnp.exp(-x))
    xs_pos = x_sigmoid
    xs_neg = jnp.minimum((1.0 - x_sigmoid) + CLIP, 1.0)
    los_pos = y_i * jnp.log(jnp.maximum(xs_pos, EPS))
    los_neg = (1.0 - y_i) * jnp.log(jnp.maximum(xs_neg, EPS))
    loss_el = los_pos + los_neg
    pt = xs_pos * y_i + xs_neg * (1.0 - y_i)
    one_m_pt = 1.0 - pt
    # (1-pt)^gamma with binary targets: static-gamma power by squaring (VPU only for 1 / 4).
    w = jnp.where(y_i > 0.0, _static_pow(one_m_pt, GAMMA_POS),
                  _static_pow(one_m_pt, GAMMA_NEG))
    asl_rows = jnp.sum(loss_el * w, axis=1, keepdims=True)                  # (bi, 1)
    asl_p = -jnp.sum(jnp.where(rvb, asl_rows, 0.0), axis=0, keepdims=True)  # (1, 1)

    # ================= Reconstruction (NLL) loss =================
    # sum_m (f_bm - mu_bc)^2 = ||f_b||^2 - 2*mu_bc*sum_m f_bm + M*mu_bc^2  (no (B,M,C) temp)
    sd2_i = sd_i * sd_i
    f_sum = jnp.sum(feat, axis=1, keepdims=True)                            # (bi, 1)
    f_sq = jnp.sum(feat * feat, axis=1, keepdims=True)                      # (bi, 1)
    quad = f_sq - 2.0 * mu_i * f_sum + m_f * (mu_i * mu_i)                  # (bi, cp)
    clipped = jnp.maximum(jnp.exp(-0.5 * quad / sd2_i), TINY)
    inner = jnp.sum(y_i * x_sigmoid * clipped, axis=1, keepdims=True)       # (bi, 1)
    denom = jnp.sum(x_sigmoid * clipped, axis=1, keepdims=True)             # (bi, 1)
    logged = -jnp.log(jnp.maximum(inner / denom, EPS))                      # (bi, 1)
    nll_p = jnp.sum(jnp.where(rvb, logged, 0.0), axis=0, keepdims=True)     # (1, 1)

    # ================= Bhattacharyya / KMCL (BD) loss =================
    two_sd_i = 2.0 * sd_i
    qm = 0.25 * m_f
    half = m_true // 2
    odd = (m_true % 2) == 1
    n_chunks = b_pad // bj

    def chunk(jc, carry):
        ld_acc, s1_acc = carry
        j_raw = jc * bj
        j_hint = j_raw if isinstance(j_raw, int) else pl.multiple_of(j_raw, bj)
        mu_j = mu_ref[pl.ds(j_hint, bj), :]
        sd_j = sd_ref[pl.ds(j_hint, bj), :]
        y_j = y_ref[pl.ds(j_hint, bj), :]

        nu = sd2_i[:, None, :] + (sd_j * sd_j)[None, :, :]          # (bi, bj, cp)
        inv_nu = pl.reciprocal(nu, approx=True)                     # shared EUP reciprocal
        # exp(-first) == (2*sd_i*sd_j/nu)**(M/2): repeated squaring, no per-element log.
        r = (two_sd_i[:, None, :] * sd_j[None, :, :]) * inv_nu
        r_pow = _ipow(r, half)
        if odd:
            r_pow = r_pow * jnp.sqrt(r)
        mu_diff = mu_i[:, None, :] - mu_j[None, :, :]
        second = qm * (mu_diff * mu_diff) * inv_nu
        bc = r_pow * jnp.exp(-second)                               # == exp(-(first+second))
        er = jnp.exp(bc * inv_temp)                                 # in (1, e^(1/temp)]

        gi = lax.broadcasted_iota(jnp.int32, (bi, bj), 0) + i_raw
        gj = lax.broadcasted_iota(jnp.int32, (bi, bj), 1) + j_raw
        keep = ((gi != gj) & (gj < b_true)).astype(jnp.float32)[:, :, None]

        mt = (y_i[:, None, :] * y_j[None, :, :]) * keep             # binary label products
        ld_acc = ld_acc + jnp.sum(er * keep, axis=1)                # (bi, cp)
        s1_acc = s1_acc + jnp.sum(jnp.sum(bc * mt, axis=2),
                                  axis=1, keepdims=True)            # (bi, 1)
        return ld_acc, s1_acc

    init = (jnp.zeros((bi, cp), jnp.float32), jnp.zeros((bi, 1), jnp.float32))
    if n_chunks <= 2:
        carry = init
        for step in range(n_chunks):
            carry = chunk(step, carry)
        log_denom, s1 = carry
    else:
        log_denom, s1 = lax.fori_loop(0, n_chunks, chunk, init)

    # Per-(i, j) label statistics over the full batch (MXU Gram matrix; bf16 is exact for
    # 0/1 labels).  union = |l_i| + |l_j| - overlap for binary labels.
    y_all = y_ref[...]
    overlap = lax.dot_general(y_i.astype(jnp.bfloat16), y_all.astype(jnp.bfloat16),
                              (((1,), (1,)), ((), ())),
                              preferred_element_type=jnp.float32)    # (bi, b_pad)
    gi2 = lax.broadcasted_iota(jnp.int32, (bi, b_pad), 0) + i_raw
    gj2 = lax.broadcasted_iota(jnp.int32, (bi, b_pad), 1)
    valid = (gi2 != gj2) & (overlap > 0.5)                           # == "row_sum != 0"
    rs_i = jnp.sum(y_i, axis=1, keepdims=True)                       # (bi, 1)
    rs_j = rowsum_ref[...]                                           # (1, b_pad) hoisted
    union = jnp.maximum(rs_i + rs_j - overlap, 1.0)
    jacc = overlap / union
    log_jacc = jnp.where(valid, jnp.log(jnp.where(valid, jacc, 1.0)), 0.0)
    njlog = jnp.sum(overlap * log_jacc, axis=1, keepdims=True)       # (bi, 1)
    card = jnp.sum(valid.astype(jnp.float32), axis=1, keepdims=True) # (bi, 1)

    # Log-decomposition of the reference's per-element log(arg):
    #   sum over active (j,c) of log(exp_result/log_denom * jacc)
    #     = S1/TEMP + sum_c n_c * (-log log_denom_c) + sum_j overlap_ij * log(jacc_ij)
    # with n_c = y_i * (colsum_y - y_i); active rows are exactly {j != i : overlap > 0}.
    n_c = y_i * (colsum_ref[...] - y_i)                              # (bi, cp)
    log_ld = jnp.log(jnp.maximum(log_denom, TINY))                   # (bi, cp)
    k_sum = s1 * inv_temp - jnp.sum(n_c * log_ld, axis=1, keepdims=True) + njlog
    kn = jnp.where(card > 0.0, -k_sum / jnp.where(card > 0.0, card, 1.0), 0.0)
    bd_p = jnp.sum(kn, axis=0, keepdims=True)                        # (1, 1)

    # Lane-dense (8, 128) partial-sum block: [asl, nll, bd] in row 0, lanes 0..2; rest 0.
    rr = lax.broadcasted_iota(jnp.int32, (8, LANE), 0)
    cc = lax.broadcasted_iota(jnp.int32, (8, LANE), 1)
    row0 = rr == 0
    out = jnp.where(row0 & (cc == 0), asl_p, 0.0)
    out = out + jnp.where(row0 & (cc == 1), nll_p, 0.0)
    out = out + jnp.where(row0 & (cc == 2), bd_p, 0.0)
    out_ref[...] = out.astype(jnp.float32)


def _round_up(v, q):
    return ((v + q - 1) // q) * q


def _divisors_mult8(n, cap):
    cand = [d for d in range(8, min(n, cap) + 1, 8) if n % d == 0]
    return cand if cand else [8]


def _pick_tiles(b, cp, vmem_limit):
    """Pick (bi, bj, b_pad): batch padded to a sublane multiple; i-block and j-chunk sizes
    chosen so ~10 live (bi, bj, cp) f32 cube temps fit under the scoped-VMEM budget."""
    quantum = 8 if b <= 64 else 32
    b_pad = _round_up(max(b, 1), quantum)
    resident = 3 * b_pad * cp * 4 + (b_pad + cp) * 4        # mu, sd, y + small vectors
    budget = max(vmem_limit - resident - (12 << 20), 6 << 20)
    per_pair = 10 * cp * 4                                  # ~10 live f32 cube temps
    bi, bj = 8, 8
    for bi_c in sorted(_divisors_mult8(b_pad, 64), reverse=True):
        found = 0
        for bj_c in sorted(_divisors_mult8(b_pad, 256), reverse=True):
            if bi_c * bj_c * per_pair <= budget:
                found = bj_c
                break
        if found:
            bi, bj = bi_c, found
            break
    # Prefer >= 2 i-tiles so the "parallel" grid axis can split across v7x's two TensorCores.
    if b_pad // bi < 2:
        for cand in range(bi - 8, 7, -8):
            if b_pad % cand == 0:
                bi = cand
                break
    return bi, bj, b_pad


def kmcl_loss(features, logits, mu, var, y):
    """KMCL_Loss forward (loss_case='isotropic', loss_opt='all').
    Returns (total, ASLLoss, NLLLoss, BDLoss)."""
    features = jnp.asarray(features, jnp.float32)
    logits = jnp.asarray(logits, jnp.float32)
    mu = jnp.asarray(mu, jnp.float32)
    var = jnp.asarray(var, jnp.float32)
    y = jnp.asarray(y, jnp.float32)

    b, m = features.shape
    c = logits.shape[1]
    mp = _round_up(m, LANE)
    cp = _round_up(c, LANE)

    # Generation-aware scoped-VMEM budget (128-MiB parts: 96 MiB; 64-MiB v7x-class: 48 MiB).
    try:
        vmem_cap = int(pltpu.get_tpu_info().vmem_capacity_bytes)
    except Exception:
        vmem_cap = 64 << 20
    vmem_limit = (96 << 20) if vmem_cap >= (100 << 20) else (48 << 20)

    bi, bj, b_pad = _pick_tiles(b, cp, vmem_limit)
    n_tiles = b_pad // bi
    rpad = b_pad - b

    # Padded classes are exactly inert (y=0, mu=0, sd=1, logit=-100 -> sigmoid==0); padded
    # batch rows are masked in-kernel.  Grid-invariant j-side precompute is hoisted here.
    feat_p = jnp.pad(features, ((0, rpad), (0, mp - m)))
    x_p = jnp.pad(logits, ((0, rpad), (0, cp - c)), constant_values=_PAD_LOGIT)
    mu_p = jnp.pad(mu, ((0, rpad), (0, cp - c)))
    sd = jnp.sqrt(var) + EPS2
    sd_p = jnp.pad(sd, ((0, rpad), (0, cp - c)), constant_values=1.0)
    y_p = jnp.pad(y, ((0, rpad), (0, cp - c)))
    colsum = jnp.sum(y_p, axis=0, keepdims=True)              # (1, cp)  per-class label sums
    rowsum = jnp.sum(y_p, axis=1)[None, :]                    # (1, b_pad) per-row cardinality

    kernel = partial(_kmcl_kernel, m_true=m, b_true=b, bj=bj)
    parts = pl.pallas_call(
        kernel,
        out_shape=jax.ShapeDtypeStruct((n_tiles * 8, LANE), jnp.float32),
        grid=(n_tiles,),
        in_specs=[
            pl.BlockSpec((bi, mp), lambda i: (i, 0)),        # features   (i-block)
            pl.BlockSpec((bi, cp), lambda i: (i, 0)),        # logits pi  (i-block)
            pl.BlockSpec((b_pad, cp), lambda i: (0, 0)),     # mu   (full batch, resident)
            pl.BlockSpec((b_pad, cp), lambda i: (0, 0)),     # sd   (full batch, resident)
            pl.BlockSpec((b_pad, cp), lambda i: (0, 0)),     # y    (full batch, resident)
            pl.BlockSpec((1, cp), lambda i: (0, 0)),         # per-class label sums
            pl.BlockSpec((1, b_pad), lambda i: (0, 0)),      # per-row label cardinality
        ],
        out_specs=pl.BlockSpec((8, LANE), lambda i: (i, 0)),
        compiler_params=pltpu.CompilerParams(
            dimension_semantics=("parallel",),
            vmem_limit_bytes=vmem_limit),
    )(feat_p, x_p, mu_p, sd_p, y_p, colsum, rowsum)

    asl = jnp.sum(parts[:, 0])
    nll = jnp.sum(parts[:, 1]) / b
    bd = jnp.sum(parts[:, 2]) / b
    total = asl + nll + bd
    return total, asl, nll, bd


if __name__ == "__main__":
    key = jax.random.PRNGKey(0)
    kf, kx, km, kv, ky = jax.random.split(key, 5)

    B, M, C = 4, 32, 8   # batch, feature dim, num classes
    features = jax.random.normal(kf, (B, M), dtype=jnp.float32)
    logits = jax.random.normal(kx, (B, C), dtype=jnp.float32)        # model_output['pi']
    mu = jax.random.normal(km, (B, C), dtype=jnp.float32)            # model_output['mu']
    var = jax.random.uniform(kv, (B, C), minval=0.2, maxval=1.0,
                             dtype=jnp.float32)                      # model_output['var']
    y = (jax.random.uniform(ky, (B, C)) < 0.5).astype(jnp.float32)   # binary multi-label

    total, asl, nll, bd = jax.jit(kmcl_loss)(features, logits, mu, var, y)
    jax.block_until_ready((total, asl, nll, bd))
    print("KERNEL_OK")
</pallas_src>

<mosaic_0001>
module attributes {stable_mosaic.version = 11 : i64} {
  func.func @_kmcl_kernel(%arg0: i32, %arg1: memref<8x128xf32, #tpu.memory_space<vmem>>, %arg2: memref<8x128xf32, #tpu.memory_space<vmem>>, %arg3: memref<8x128xf32, #tpu.memory_space<vmem>>, %arg4: memref<8x128xf32, #tpu.memory_space<vmem>>, %arg5: memref<8x128xf32, #tpu.memory_space<vmem>>, %arg6: memref<1x128xf32, #tpu.memory_space<vmem>>, %arg7: memref<1x8xf32, #tpu.memory_space<vmem>>, %arg8: memref<8x128xf32, #tpu.memory_space<vmem>>) attributes {dimension_semantics = [#tpu.dimension_semantics<parallel>], iteration_bounds = array<i64: 1>, scalar_prefetch = 0 : i64, scratch_operands = 0 : i64, tpu.core_type = #tpu.core_type<tc>, window_params = [{transform_indices = @transform_0, window_bounds = array<i64: 8, 128>}, {transform_indices = @transform_1, window_bounds = array<i64: 8, 128>}, {pipeline_mode = #tpu.pipeline_mode<synchronous>, transform_indices = @transform_2, window_bounds = array<i64: 8, 128>}, {pipeline_mode = #tpu.pipeline_mode<synchronous>, transform_indices = @transform_3, window_bounds = array<i64: 8, 128>}, {pipeline_mode = #tpu.pipeline_mode<synchronous>, transform_indices = @transform_4, window_bounds = array<i64: 8, 128>}, {pipeline_mode = #tpu.pipeline_mode<synchronous>, transform_indices = @transform_5, window_bounds = array<i64: 1, 128>}, {pipeline_mode = #tpu.pipeline_mode<synchronous>, transform_indices = @transform_6, window_bounds = array<i64: 1, 8>}, {transform_indices = @transform_7, window_bounds = array<i64: 8, 128>}]} {
    %c8_i32 = arith.constant 8 : i32
    %0 = arith.muli %arg0, %c8_i32 : i32
    %1 = tpu.assume_multiple %0, 8 : i32
    %2 = arith.index_cast %1 : i32 to index
    %c0 = arith.constant 0 : index
    %3 = vector.load %arg3[%2, %c0] : memref<8x128xf32, #tpu.memory_space<vmem>>, vector<8x128xf32>
    %4 = arith.index_cast %1 : i32 to index
    %c0_0 = arith.constant 0 : index
    %5 = vector.load %arg4[%4, %c0_0] : memref<8x128xf32, #tpu.memory_space<vmem>>, vector<8x128xf32>
    %6 = arith.index_cast %1 : i32 to index
    %c0_1 = arith.constant 0 : index
    %7 = vector.load %arg5[%6, %c0_1] : memref<8x128xf32, #tpu.memory_space<vmem>>, vector<8x128xf32>
    %c0_2 = arith.constant 0 : index
    %c0_3 = arith.constant 0 : index
    %8 = vector.load %arg2[%c0_2, %c0_3] : memref<8x128xf32, #tpu.memory_space<vmem>>, vector<8x128xf32>
    %c0_4 = arith.constant 0 : index
    %c0_5 = arith.constant 0 : index
    %9 = vector.load %arg1[%c0_4, %c0_5] : memref<8x128xf32, #tpu.memory_space<vmem>>, vector<8x128xf32>
    %10 = tpu.iota {dimensions = array<i32: 0>} : vector<8x1xi32>
    %11 = vector.broadcast %0 : i32 to vector<8x1xi32>
    %12 = arith.addi %10, %11 : vector<8x1xi32>
    %c4_i32 = arith.constant 4 : i32
    %13 = vector.broadcast %c4_i32 : i32 to vector<8x1xi32>
    %14 = arith.cmpi slt, %12, %13 : vector<8x1xi32>
    %cst = arith.constant 0.000000e+00 : f32
    %15 = vector.broadcast %cst : f32 to vector<8x128xf32>
    %16 = arith.subf %15, %8 : vector<8x128xf32>
    %17 = math.exp %16 : vector<8x128xf32>
    %cst_6 = arith.constant 1.000000e+00 : f32
    %18 = vector.broadcast %cst_6 : f32 to vector<8x128xf32>
    %19 = arith.addf %18, %17 : vector<8x128xf32>
    %cst_7 = arith.constant 1.000000e+00 : f32
    %20 = vector.broadcast %cst_7 : f32 to vector<8x128xf32>
    %21 = arith.divf %20, %19 : vector<8x128xf32>
    %cst_8 = arith.constant 1.000000e+00 : f32
    %22 = vector.broadcast %cst_8 : f32 to vector<8x128xf32>
    %23 = arith.subf %22, %21 : vector<8x128xf32>
    %cst_9 = arith.constant 5.000000e-02 : f32
    %24 = vector.broadcast %cst_9 : f32 to vector<8x128xf32>
    %25 = arith.addf %23, %24 : vector<8x128xf32>
    %cst_10 = arith.constant 1.000000e+00 : f32
    %26 = vector.broadcast %cst_10 : f32 to vector<8x128xf32>
    %27 = arith.minimumf %25, %26 : vector<8x128xf32>
    %cst_11 = arith.constant 1.000000e-07 : f32
    %28 = vector.broadcast %cst_11 : f32 to vector<8x128xf32>
    %29 = arith.maximumf %21, %28 : vector<8x128xf32>
    %30 = math.log %29 : vector<8x128xf32>
    %31 = arith.mulf %7, %30 : vector<8x128xf32>
    %cst_12 = arith.constant 1.000000e+00 : f32
    %32 = vector.broadcast %cst_12 : f32 to vector<8x128xf32>
    %33 = arith.subf %32, %7 : vector<8x128xf32>
    %cst_13 = arith.constant 1.000000e-07 : f32
    %34 = vector.broadcast %cst_13 : f32 to vector<8x128xf32>
    %35 = arith.maximumf %27, %34 : vector<8x128xf32>
    %36 = math.log %35 : vector<8x128xf32>
    %37 = arith.mulf %33, %36 : vector<8x128xf32>
    %38 = arith.addf %31, %37 : vector<8x128xf32>
    %39 = arith.mulf %21, %7 : vector<8x128xf32>
    %cst_14 = arith.constant 1.000000e+00 : f32
    %40 = vector.broadcast %cst_14 : f32 to vector<8x128xf32>
    %41 = arith.subf %40, %7 : vector<8x128xf32>
    %42 = arith.mulf %27, %41 : vector<8x128xf32>
    %43 = arith.addf %39, %42 : vector<8x128xf32>
    %cst_15 = arith.constant 1.000000e+00 : f32
    %44 = vector.broadcast %cst_15 : f32 to vector<8x128xf32>
    %45 = arith.subf %44, %43 : vector<8x128xf32>
    %cst_16 = arith.constant 0.000000e+00 : f32
    %46 = vector.broadcast %cst_16 : f32 to vector<8x128xf32>
    %47 = arith.cmpf ogt, %7, %46 : vector<8x128xf32>
    %48 = arith.mulf %45, %45 : vector<8x128xf32>
    %49 = arith.mulf %48, %48 : vector<8x128xf32>
    %50 = arith.select %47, %45, %49 : vector<8x128xi1>, vector<8x128xf32>
    %51 = arith.mulf %38, %50 : vector<8x128xf32>
    %cst_17 = arith.constant dense<0.000000e+00> : vector<8xf32>
    %52 = vector.multi_reduction <add>, %51, %cst_17 [1] : vector<8x128xf32> to vector<8xf32>
    %53 = vector.shape_cast %52 : vector<8xf32> to vector<8x1xf32>
    %cst_18 = arith.constant 0.000000e+00 : f32
    %54 = vector.broadcast %cst_18 : f32 to vector<8x1xf32>
    %55 = arith.select %14, %53, %54 : vector<8x1xi1>, vector<8x1xf32>
    %cst_19 = arith.constant dense<0.000000e+00> : vector<1xf32>
    %56 = vector.multi_reduction <add>, %55, %cst_19 [0] : vector<8x1xf32> to vector<1xf32>
    %57 = vector.shape_cast %56 : vector<1xf32> to vector<1x1xf32>
    %cst_20 = arith.constant 0.000000e+00 : f32
    %58 = vector.broadcast %cst_20 : f32 to vector<1x1xf32>
    %59 = arith.subf %58, %57 : vector<1x1xf32>
    %60 = arith.mulf %5, %5 : vector<8x128xf32>
    %cst_21 = arith.constant dense<0.000000e+00> : vector<8xf32>
    %61 = vector.multi_reduction <add>, %9, %cst_21 [1] : vector<8x128xf32> to vector<8xf32>
    %62 = vector.shape_cast %61 : vector<8xf32> to vector<8x1xf32>
    %63 = arith.mulf %9, %9 : vector<8x128xf32>
    %cst_22 = arith.constant dense<0.000000e+00> : vector<8xf32>
    %64 = vector.multi_reduction <add>, %63, %cst_22 [1] : vector<8x128xf32> to vector<8xf32>
    %65 = vector.shape_cast %64 : vector<8xf32> to vector<8x1xf32>
    %cst_23 = arith.constant 2.000000e+00 : f32
    %66 = vector.broadcast %cst_23 : f32 to vector<8x128xf32>
    %67 = arith.mulf %66, %3 : vector<8x128xf32>
    %68 = vector.broadcast %62 : vector<8x1xf32> to vector<8x128xf32>
    %69 = arith.mulf %67, %68 : vector<8x128xf32>
    %70 = vector.broadcast %65 : vector<8x1xf32> to vector<8x128xf32>
    %71 = arith.subf %70, %69 : vector<8x128xf32>
    %72 = arith.mulf %3, %3 : vector<8x128xf32>
    %cst_24 = arith.constant 3.200000e+01 : f32
    %73 = vector.broadcast %cst_24 : f32 to vector<8x128xf32>
    %74 = arith.mulf %73, %72 : vector<8x128xf32>
    %75 = arith.addf %71, %74 : vector<8x128xf32>
    %cst_25 = arith.constant -5.000000e-01 : f32
    %76 = vector.broadcast %cst_25 : f32 to vector<8x128xf32>
    %77 = arith.mulf %76, %75 : vector<8x128xf32>
    %78 = arith.divf %77, %60 : vector<8x128xf32>
    %79 = math.exp %78 : vector<8x128xf32>
    %cst_26 = arith.constant 1.175490e-38 : f32
    %80 = vector.broadcast %cst_26 : f32 to vector<8x128xf32>
    %81 = arith.maximumf %79, %80 : vector<8x128xf32>
    %82 = arith.mulf %7, %21 : vector<8x128xf32>
    %83 = arith.mulf %82, %81 : vector<8x128xf32>
    %cst_27 = arith.constant dense<0.000000e+00> : vector<8xf32>
    %84 = vector.multi_reduction <add>, %83, %cst_27 [1] : vector<8x128xf32> to vector<8xf32>
    %85 = vector.shape_cast %84 : vector<8xf32> to vector<8x1xf32>
    %86 = arith.mulf %21, %81 : vector<8x128xf32>
    %cst_28 = arith.constant dense<0.000000e+00> : vector<8xf32>
    %87 = vector.multi_reduction <add>, %86, %cst_28 [1] : vector<8x128xf32> to vector<8xf32>
    %88 = vector.shape_cast %87 : vector<8xf32> to vector<8x1xf32>
    %89 = arith.divf %85, %88 : vector<8x1xf32>
    %cst_29 = arith.constant 1.000000e-07 : f32
    %90 = vector.broadcast %cst_29 : f32 to vector<8x1xf32>
    %91 = arith.maximumf %89, %90 : vector<8x1xf32>
    %92 = math.log %91 : vector<8x1xf32>
    %cst_30 = arith.constant 0.000000e+00 : f32
    %93 = vector.broadcast %cst_30 : f32 to vector<8x1xf32>
    %94 = arith.subf %93, %92 : vector<8x1xf32>
    %cst_31 = arith.constant 0.000000e+00 : f32
    %95 = vector.broadcast %cst_31 : f32 to vector<8x1xf32>
    %96 = arith.select %14, %94, %95 : vector<8x1xi1>, vector<8x1xf32>
    %cst_32 = arith.constant dense<0.000000e+00> : vector<1xf32>
    %97 = vector.multi_reduction <add>, %96, %cst_32 [0] : vector<8x1xf32> to vector<1xf32>
    %98 = vector.shape_cast %97 : vector<1xf32> to vector<1x1xf32>
    %cst_33 = arith.constant 2.000000e+00 : f32
    %99 = vector.broadcast %cst_33 : f32 to vector<8x128xf32>
    %100 = arith.mulf %99, %5 : vector<8x128xf32>
    %cst_34 = arith.constant 0.000000e+00 : f32
    %101 = vector.broadcast %cst_34 : f32 to vector<8x128xf32>
    %cst_35 = arith.constant 0.000000e+00 : f32
    %102 = vector.broadcast %cst_35 : f32 to vector<8x1xf32>
    %c0_36 = arith.constant 0 : index
    %c0_37 = arith.constant 0 : index
    %103 = vector.load %arg3[%c0_36, %c0_37] : memref<8x128xf32, #tpu.memory_space<vmem>>, vector<8x128xf32>
    %c0_38 = arith.constant 0 : index
    %c0_39 = arith.constant 0 : index
    %104 = vector.load %arg4[%c0_38, %c0_39] : memref<8x128xf32, #tpu.memory_space<vmem>>, vector<8x128xf32>
    %c0_40 = arith.constant 0 : index
    %c0_41 = arith.constant 0 : index
    %105 = vector.load %arg5[%c0_40, %c0_41] : memref<8x128xf32, #tpu.memory_space<vmem>>, vector<8x128xf32>
    %106 = vector.shape_cast %60 : vector<8x128xf32> to vector<8x1x128xf32>
    %107 = arith.mulf %104, %104 : vector<8x128xf32>
    %108 = vector.shape_cast %107 : vector<8x128xf32> to vector<1x8x128xf32>
    %109 = vector.broadcast %106 : vector<8x1x128xf32> to vector<8x8x128xf32>
    %110 = vector.broadcast %108 : vector<1x8x128xf32> to vector<8x8x128xf32>
    %111 = arith.addf %109, %110 : vector<8x8x128xf32>
    %112 = tpu.reciprocal %111 {approx = true} : vector<8x8x128xf32> -> vector<8x8x128xf32>
    %113 = vector.shape_cast %100 : vector<8x128xf32> to vector<8x1x128xf32>
    %114 = vector.shape_cast %104 : vector<8x128xf32> to vector<1x8x128xf32>
    %115 = vector.broadcast %113 : vector<8x1x128xf32> to vector<8x8x128xf32>
    %116 = vector.broadcast %114 : vector<1x8x128xf32> to vector<8x8x128xf32>
    %117 = arith.mulf %115, %116 : vector<8x8x128xf32>
    %118 = arith.mulf %117, %112 : vector<8x8x128xf32>
    %119 = arith.mulf %118, %118 : vector<8x8x128xf32>
    %120 = arith.mulf %119, %119 : vector<8x8x128xf32>
    %121 = arith.mulf %120, %120 : vector<8x8x128xf32>
    %122 = arith.mulf %121, %121 : vector<8x8x128xf32>
    %123 = vector.shape_cast %3 : vector<8x128xf32> to vector<8x1x128xf32>
    %124 = vector.shape_cast %103 : vector<8x128xf32> to vector<1x8x128xf32>
    %125 = vector.broadcast %123 : vector<8x1x128xf32> to vector<8x8x128xf32>
    %126 = vector.broadcast %124 : vector<1x8x128xf32> to vector<8x8x128xf32>
    %127 = arith.subf %125, %126 : vector<8x8x128xf32>
    %128 = arith.mulf %127, %127 : vector<8x8x128xf32>
    %cst_42 = arith.constant 8.000000e+00 : f32
    %129 = vector.broadcast %cst_42 : f32 to vector<8x8x128xf32>
    %130 = arith.mulf %129, %128 : vector<8x8x128xf32>
    %131 = arith.mulf %130, %112 : vector<8x8x128xf32>
    %cst_43 = arith.constant 0.000000e+00 : f32
    %132 = vector.broadcast %cst_43 : f32 to vector<8x8x128xf32>
    %133 = arith.subf %132, %131 : vector<8x8x128xf32>
    %134 = math.exp %133 : vector<8x8x128xf32>
    %135 = arith.mulf %122, %134 : vector<8x8x128xf32>
    %cst_44 = arith.constant 5.88235283 : f32
    %136 = vector.broadcast %cst_44 : f32 to vector<8x8x128xf32>
    %137 = arith.mulf %135, %136 : vector<8x8x128xf32>
    %138 = math.exp %137 : vector<8x8x128xf32>
    %139 = tpu.iota {dimensions = array<i32: 0>} : vector<8x8xi32>
    %140 = vector.broadcast %0 : i32 to vector<8x8xi32>
    %141 = arith.addi %139, %140 : vector<8x8xi32>
    %142 = tpu.iota {dimensions = array<i32: 1>} : vector<8x8xi32>
    %c0_i32 = arith.constant 0 : i32
    %143 = vector.broadcast %c0_i32 : i32 to vector<8x8xi32>
    %144 = arith.addi %142, %143 : vector<8x8xi32>
    %145 = arith.cmpi ne, %141, %144 : vector<8x8xi32>
    %c4_i32_45 = arith.constant 4 : i32
    %146 = vector.broadcast %c4_i32_45 : i32 to vector<8x8xi32>
    %147 = arith.cmpi slt, %144, %146 : vector<8x8xi32>
    %148 = arith.andi %145, %147 : vector<8x8xi1>
    %149 = arith.extui %148 : vector<8x8xi1> to vector<8x8xi32>
    %150 = arith.sitofp %149 : vector<8x8xi32> to vector<8x8xf32>
    %151 = vector.shape_cast %150 : vector<8x8xf32> to vector<8x8x1xf32>
    %152 = vector.shape_cast %7 : vector<8x128xf32> to vector<8x1x128xf32>
    %153 = vector.shape_cast %105 : vector<8x128xf32> to vector<1x8x128xf32>
    %154 = vector.broadcast %152 : vector<8x1x128xf32> to vector<8x8x128xf32>
    %155 = vector.broadcast %153 : vector<1x8x128xf32> to vector<8x8x128xf32>
    %156 = arith.mulf %154, %155 : vector<8x8x128xf32>
    %157 = vector.broadcast %151 : vector<8x8x1xf32> to vector<8x8x128xf32>
    %158 = arith.mulf %156, %157 : vector<8x8x128xf32>
    %159 = vector.broadcast %151 : vector<8x8x1xf32> to vector<8x8x128xf32>
    %160 = arith.mulf %138, %159 : vector<8x8x128xf32>
    %cst_46 = arith.constant dense<0.000000e+00> : vector<8x128xf32>
    %161 = vector.multi_reduction <add>, %160, %cst_46 [1] : vector<8x8x128xf32> to vector<8x128xf32>
    %162 = arith.addf %101, %161 : vector<8x128xf32>
    %163 = arith.mulf %135, %158 : vector<8x8x128xf32>
    %cst_47 = arith.constant dense<0.000000e+00> : vector<8x8xf32>
    %164 = vector.multi_reduction <add>, %163, %cst_47 [2] : vector<8x8x128xf32> to vector<8x8xf32>
    %cst_48 = arith.constant dense<0.000000e+00> : vector<8xf32>
    %165 = vector.multi_reduction <add>, %164, %cst_48 [1] : vector<8x8xf32> to vector<8xf32>
    %166 = vector.shape_cast %165 : vector<8xf32> to vector<8x1xf32>
    %167 = arith.addf %102, %166 : vector<8x1xf32>
    %c0_49 = arith.constant 0 : index
    %c0_50 = arith.constant 0 : index
    %168 = vector.load %arg5[%c0_49, %c0_50] : memref<8x128xf32, #tpu.memory_space<vmem>>, vector<8x128xf32>
    %169 = arith.truncf %7 : vector<8x128xf32> to vector<8x128xbf16>
    %170 = arith.truncf %168 : vector<8x128xf32> to vector<8x128xbf16>
    %cst_51 = arith.constant dense<0.000000e+00> : vector<8x8xf32>
    %171 = tpu.matmul %169, %170, %cst_51 {dimension_numbers = #tpu.dot_dimension_numbers<[1], [1], [0], [0], [0, 0, 1, 0], [], []>} : vector<8x128xbf16>, vector<8x128xbf16>, vector<8x8xf32> -> vector<8x8xf32>
    %172 = tpu.iota {dimensions = array<i32: 0>} : vector<8x8xi32>
    %173 = vector.broadcast %0 : i32 to vector<8x8xi32>
    %174 = arith.addi %172, %173 : vector<8x8xi32>
    %175 = tpu.iota {dimensions = array<i32: 1>} : vector<8x8xi32>
    %176 = arith.cmpi ne, %174, %175 : vector<8x8xi32>
    %cst_52 = arith.constant 5.000000e-01 : f32
    %177 = vector.broadcast %cst_52 : f32 to vector<8x8xf32>
    %178 = arith.cmpf ogt, %171, %177 : vector<8x8xf32>
    %179 = arith.andi %176, %178 : vector<8x8xi1>
    %cst_53 = arith.constant dense<0.000000e+00> : vector<8xf32>
    %180 = vector.multi_reduction <add>, %7, %cst_53 [1] : vector<8x128xf32> to vector<8xf32>
    %181 = vector.shape_cast %180 : vector<8xf32> to vector<8x1xf32>
    %c0_54 = arith.constant 0 : index
    %c0_55 = arith.constant 0 : index
    %182 = vector.load %arg7[%c0_54, %c0_55] : memref<1x8xf32, #tpu.memory_space<vmem>>, vector<1x8xf32>
    %183 = vector.broadcast %181 : vector<8x1xf32> to vector<8x8xf32>
    %184 = vector.broadcast %182 : vector<1x8xf32> to vector<8x8xf32>
    %185 = arith.addf %183, %184 : vector<8x8xf32>
    %186 = arith.subf %185, %171 : vector<8x8xf32>
    %cst_56 = arith.constant 1.000000e+00 : f32
    %187 = vector.broadcast %cst_56 : f32 to vector<8x8xf32>
    %188 = arith.maximumf %186, %187 : vector<8x8xf32>
    %189 = arith.divf %171, %188 : vector<8x8xf32>
    %cst_57 = arith.constant 1.000000e+00 : f32
    %190 = vector.broadcast %cst_57 : f32 to vector<8x8xf32>
    %191 = arith.select %179, %189, %190 : vector<8x8xi1>, vector<8x8xf32>
    %192 = math.log %191 : vector<8x8xf32>
    %cst_58 = arith.constant 0.000000e+00 : f32
    %193 = vector.broadcast %cst_58 : f32 to vector<8x8xf32>
    %194 = arith.select %179, %192, %193 : vector<8x8xi1>, vector<8x8xf32>
    %195 = arith.mulf %171, %194 : vector<8x8xf32>
    %cst_59 = arith.constant dense<0.000000e+00> : vector<8xf32>
    %196 = vector.multi_reduction <add>, %195, %cst_59 [1] : vector<8x8xf32> to vector<8xf32>
    %197 = vector.shape_cast %196 : vector<8xf32> to vector<8x1xf32>
    %198 = arith.extui %179 : vector<8x8xi1> to vector<8x8xi32>
    %199 = arith.sitofp %198 : vector<8x8xi32> to vector<8x8xf32>
    %cst_60 = arith.constant dense<0.000000e+00> : vector<8xf32>
    %200 = vector.multi_reduction <add>, %199, %cst_60 [1] : vector<8x8xf32> to vector<8xf32>
    %201 = vector.shape_cast %200 : vector<8xf32> to vector<8x1xf32>
    %c0_61 = arith.constant 0 : index
    %c0_62 = arith.constant 0 : index
    %202 = vector.load %arg6[%c0_61, %c0_62] : memref<1x128xf32, #tpu.memory_space<vmem>>, vector<1x128xf32>
    %203 = vector.broadcast %202 : vector<1x128xf32> to vector<8x128xf32>
    %204 = arith.subf %203, %7 : vector<8x128xf32>
    %205 = arith.mulf %7, %204 : vector<8x128xf32>
    %cst_63 = arith.constant 1.175490e-38 : f32
    %206 = vector.broadcast %cst_63 : f32 to vector<8x128xf32>
    %207 = arith.maximumf %162, %206 : vector<8x128xf32>
    %208 = math.log %207 : vector<8x128xf32>
    %cst_64 = arith.constant 5.88235283 : f32
    %209 = vector.broadcast %cst_64 : f32 to vector<8x1xf32>
    %210 = arith.mulf %167, %209 : vector<8x1xf32>
    %211 = arith.mulf %205, %208 : vector<8x128xf32>
    %cst_65 = arith.constant dense<0.000000e+00> : vector<8xf32>
    %212 = vector.multi_reduction <add>, %211, %cst_65 [1] : vector<8x128xf32> to vector<8xf32>
    %213 = vector.shape_cast %212 : vector<8xf32> to vector<8x1xf32>
    %214 = arith.subf %210, %213 : vector<8x1xf32>
    %215 = arith.addf %214, %197 : vector<8x1xf32>
    %cst_66 = arith.constant 0.000000e+00 : f32
    %216 = vector.broadcast %cst_66 : f32 to vector<8x1xf32>
    %217 = arith.cmpf ogt, %201, %216 : vector<8x1xf32>
    %cst_67 = arith.constant 0.000000e+00 : f32
    %218 = vector.broadcast %cst_67 : f32 to vector<8x1xf32>
    %219 = arith.subf %218, %215 : vector<8x1xf32>
    %cst_68 = arith.constant 0.000000e+00 : f32
    %220 = vector.broadcast %cst_68 : f32 to vector<8x1xf32>
    %221 = arith.cmpf ogt, %201, %220 : vector<8x1xf32>
    %cst_69 = arith.constant 1.000000e+00 : f32
    %222 = vector.broadcast %cst_69 : f32 to vector<8x1xf32>
    %223 = arith.select %221, %201, %222 : vector<8x1xi1>, vector<8x1xf32>
    %224 = arith.divf %219, %223 : vector<8x1xf32>
    %cst_70 = arith.constant 0.000000e+00 : f32
    %225 = vector.broadcast %cst_70 : f32 to vector<8x1xf32>
    %226 = arith.select %217, %224, %225 : vector<8x1xi1>, vector<8x1xf32>
    %cst_71 = arith.constant dense<0.000000e+00> : vector<1xf32>
    %227 = vector.multi_reduction <add>, %226, %cst_71 [0] : vector<8x1xf32> to vector<1xf32>
    %228 = vector.shape_cast %227 : vector<1xf32> to vector<1x1xf32>
    %229 = tpu.iota {dimensions = array<i32: 0>} : vector<8x128xi32>
    %230 = tpu.iota {dimensions = array<i32: 1>} : vector<8x128xi32>
    %c0_i32_72 = arith.constant 0 : i32
    %231 = vector.broadcast %c0_i32_72 : i32 to vector<8x128xi32>
    %232 = arith.cmpi eq, %229, %231 : vector<8x128xi32>
    %c0_i32_73 = arith.constant 0 : i32
    %233 = vector.broadcast %c0_i32_73 : i32 to vector<8x128xi32>
    %234 = arith.cmpi eq, %230, %233 : vector<8x128xi32>
    %235 = arith.andi %232, %234 : vector<8x128xi1>
    %cst_74 = arith.constant 0.000000e+00 : f32
    %236 = vector.shape_cast %59 : vector<1x1xf32> to vector<1x1xf32>
    %237 = vector.broadcast %236 : vector<1x1xf32> to vector<8x128xf32>
    %238 = vector.broadcast %cst_74 : f32 to vector<8x128xf32>
    %239 = arith.select %235, %237, %238 : vector<8x128xi1>, vector<8x128xf32>
    %c1_i32 = arith.constant 1 : i32
    %240 = vector.broadcast %c1_i32 : i32 to vector<8x128xi32>
    %241 = arith.cmpi eq, %230, %240 : vector<8x128xi32>
    %242 = arith.andi %232, %241 : vector<8x128xi1>
    %cst_75 = arith.constant 0.000000e+00 : f32
    %243 = vector.shape_cast %98 : vector<1x1xf32> to vector<1x1xf32>
    %244 = vector.broadcast %243 : vector<1x1xf32> to vector<8x128xf32>
    %245 = vector.broadcast %cst_75 : f32 to vector<8x128xf32>
    %246 = arith.select %242, %244, %245 : vector<8x128xi1>, vector<8x128xf32>
    %247 = arith.addf %239, %246 : vector<8x128xf32>
    %c2_i32 = arith.constant 2 : i32
    %248 = vector.broadcast %c2_i32 : i32 to vector<8x128xi32>
    %249 = arith.cmpi eq, %230, %248 : vector<8x128xi32>
    %250 = arith.andi %232, %249 : vector<8x128xi1>
    %cst_76 = arith.constant 0.000000e+00 : f32
    %251 = vector.shape_cast %228 : vector<1x1xf32> to vector<1x1xf32>
    %252 = vector.broadcast %251 : vector<1x1xf32> to vector<8x128xf32>
    %253 = vector.broadcast %cst_76 : f32 to vector<8x128xf32>
    %254 = arith.select %250, %252, %253 : vector<8x128xi1>, vector<8x128xf32>
    %255 = arith.addf %247, %254 : vector<8x128xf32>
    %c0_77 = arith.constant 0 : index
    %c0_78 = arith.constant 0 : index
    %256 = vector.load %arg8[%c0_77, %c0_78] : memref<8x128xf32, #tpu.memory_space<vmem>>, vector<8x128xf32>
    tpu.vector_store %arg8[%c0_77, %c0_78], %255 {strides = array<i32>} : memref<8x128xf32, #tpu.memory_space<vmem>>, vector<8x128xf32>,
    return
  }
  func.func @transform_0(%arg0: i32) -> (i32, i32) {
    %c0_i32 = arith.constant 0 : i32
    %c0_i32_0 = arith.constant 0 : i32
    return %arg0, %c0_i32 : i32, i32
  }
  func.func @transform_1(%arg0: i32) -> (i32, i32) {
    %c0_i32 = arith.constant 0 : i32
    %c0_i32_0 = arith.constant 0 : i32
    return %arg0, %c0_i32 : i32, i32
  }
  func.func @transform_2(%arg0: i32) -> (i32, i32) {
    %c0_i32 = arith.constant 0 : i32
    %c0_i32_0 = arith.constant 0 : i32
    %c0_i32_1 = arith.constant 0 : i32
    return %c0_i32, %c0_i32_0 : i32, i32
  }
  func.func @transform_3(%arg0: i32) -> (i32, i32) {
    %c0_i32 = arith.constant 0 : i32
    %c0_i32_0 = arith.constant 0 : i32
    %c0_i32_1 = arith.constant 0 : i32
    return %c0_i32, %c0_i32_0 : i32, i32
  }
  func.func @transform_4(%arg0: i32) -> (i32, i32) {
    %c0_i32 = arith.constant 0 : i32
    %c0_i32_0 = arith.constant 0 : i32
    %c0_i32_1 = arith.constant 0 : i32
    return %c0_i32, %c0_i32_0 : i32, i32
  }
  func.func @transform_5(%arg0: i32) -> (i32, i32) {
    %c0_i32 = arith.constant 0 : i32
    %c0_i32_0 = arith.constant 0 : i32
    %c0_i32_1 = arith.constant 0 : i32
    return %c0_i32, %c0_i32_0 : i32, i32
  }
  func.func @transform_6(%arg0: i32) -> (i32, i32) {
    %c0_i32 = arith.constant 0 : i32
    %c0_i32_0 = arith.constant 0 : i32
    %c0_i32_1 = arith.constant 0 : i32
    return %c0_i32, %c0_i32_0 : i32, i32
  }
  func.func @transform_7(%arg0: i32) -> (i32, i32) {
    %c0_i32 = arith.constant 0 : i32
    %c0_i32_0 = arith.constant 0 : i32
    return %arg0, %c0_i32 : i32, i32
  }
}

</mosaic_0001>

<llo_original>
// kernel: kmcl_loss.1
$region0: #{kmcl_loss.1}
  #allocation0 [shape = 'u32[]', space=smem, size = 0x4, offset = 0x4, fixed_abs, tag = 'smem constant byte address 0x4 - core index']
  #allocation1 [shape = 'u32[144,128]{1,0:T(1,128)}', space=vmem, size = 0x12000, scoped, tag = 'internal scratch']
  %s0 = inlined_call_operand.vmem [shape: f32[8,128], index: 0, kind: input, shape index: {}]
  %s1 = inlined_call_operand.vmem [shape: f32[8,128], index: 1, kind: input, shape index: {}]
  %s2 = inlined_call_operand.vmem [shape: f32[8,128], index: 2, kind: input, shape index: {}]
  %s3 = inlined_call_operand.vmem [shape: f32[8,128], index: 3, kind: input, shape index: {}]
  %s4 = inlined_call_operand.vmem [shape: f32[8,128], index: 4, kind: input, shape index: {}]
  %s5 = inlined_call_operand.vmem [shape: f32[1,128], index: 5, kind: input, shape index: {}]
  %s6 = inlined_call_operand.vmem [shape: f32[1,8], index: 6, kind: input, shape index: {}]
  %s7 = inlined_call_operand.vmem [shape: f32[8,128], index: 7, kind: output, shape index: {}]
  %s8 = sld [smem:[#allocation0]]
  $region38: #{kmcl_loss.1} parent=0
    _
  %s10 = ssub.s32 1, %s8
  %s11 = scalar_select 0, %s10, %s8
  // Predicated region
  $region2: #{kmcl_loss.1} parent=0 // pred_check
    _
  $region3: #{kmcl_loss.1} parent=0 // pred_check_branch
    %13 = sbr.rel (0) target = $region5
  $region4: #{kmcl_loss.1} parent=0 // pred_region
    _
  $region5: #{kmcl_loss.1} parent=0 // pred_fallthru
    _
  // Predicated region
  $region6: #{kmcl_loss.1} parent=0 // pred_check
    _
  $region7: #{kmcl_loss.1} parent=0 // pred_check_branch
    %15 = sbr.rel (0) target = $region9
  $region8: #{kmcl_loss.1} parent=0 // pred_region
    _
  $region9: #{kmcl_loss.1} parent=0 // pred_fallthru
    _
  // Predicated region
  $region10: #{kmcl_loss.1} parent=0 // pred_check
    _
  $region11: #{kmcl_loss.1} parent=0 // pred_check_branch
    %17 = sbr.rel (0) target = $region13
  $region12: #{kmcl_loss.1} parent=0 // pred_region
    _
  $region13: #{kmcl_loss.1} parent=0 // pred_fallthru
    _
  // Predicated region
  $region14: #{kmcl_loss.1} parent=0 // pred_check
    _
  $region15: #{kmcl_loss.1} parent=0 // pred_check_branch
    %19 = sbr.rel (0) target = $region17
  $region16: #{kmcl_loss.1} parent=0 // pred_region
    _
  $region17: #{kmcl_loss.1} parent=0 // pred_fallthru
    _
  // Predicated region
  $region18: #{kmcl_loss.1} parent=0 // pred_check
    _
  $region19: #{kmcl_loss.1} parent=0 // pred_check_branch
    %21 = sbr.rel (0) target = $region21
  $region20: #{kmcl_loss.1} parent=0 // pred_region
    _
  $region21: #{kmcl_loss.1} parent=0 // pred_fallthru
    _
  // Predicated region
  $region22: #{kmcl_loss.1} parent=0 // pred_check
    _
  $region23: #{kmcl_loss.1} parent=0 // pred_check_branch
    %23 = sbr.rel (0) target = $region25
  $region24: #{kmcl_loss.1} parent=0 // pred_region
    _
  $region25: #{kmcl_loss.1} parent=0 // pred_fallthru
    _
  // Predicated region
  $region26: #{kmcl_loss.1} parent=0 // pred_check
    _
  $region27: #{kmcl_loss.1} parent=0 // pred_check_branch
    %25 = sbr.rel (0) target = $region29
  $region28: #{kmcl_loss.1} parent=0 // pred_region
    _
  $region29: #{kmcl_loss.1} parent=0 // pred_fallthru
    _
  %s27 = smul.u32 0, 8
  %s28 = scalar_lea.vmem %s2, %s27
  %v29 = vld [vmem:[%s28] sm:$0xff]
  %s30 = scalar_lea.vmem %s3, %s27
  %v31 = vld [vmem:[%s30] sm:$0xff]
  %s32 = scalar_lea.vmem %s4, %s27
  %v33 = vld [vmem:[%s32] sm:$0xff]
  %v34 = vld [vmem:[%s1] sm:$0xff]
  %v35 = vld [vmem:[%s0] sm:$0xff]
  %v36 = vlaneseq
  %v37 = vshrl.u32 %v36, 7
  %v38 = vstv %s27
  %v39 = vadd.s32 %v37, %v38
  %vm40 = vcmp.lt.s32.totalorder %v39, 4
  %v41 = vsub.f32 0.0, %v34
  %v42 = vmul.f32 %v41, 1.442695
  %v43 = vpow.pop %v42
  %v44 = vadd.f32 %v43, 1.0
  %v45 = vrcp.pop %v44
  %v46 = vmul.f32 1.0, %v45
  %v47 = vsub.f32 1.0, %v46
  %v48 = vadd.f32 %v47, 0.05
  %v49 = vmin.f32 %v48, 1.0
  %v50 = vmax.f32 %v46, 1e-07
  %v51 = vlog2.pop %v50
  %v52 = vmul.f32 %v51, 0.6931472
  %v53 = vmul.f32 %v33, %v52
  %v54 = vsub.f32 1.0, %v33
  %v55 = vmax.f32 %v49, 1e-07
  %v56 = vlog2.pop %v55
  %v57 = vmul.f32 %v56, 0.6931472
  %v58 = vmul.f32 %v54, %v57
  %v59 = vadd.f32 %v53, %v58
  %v60 = vmul.f32 %v46, %v33
  %v61 = vmul.f32 %v49, %v54
  %v62 = vadd.f32 %v60, %v61
  %v63 = vsub.f32 1.0, %v62
  %vm64 = vcmp.gt.f32.partialorder %v33, 0.0
  %v65 = vmul.f32 %v63, %v63
  %v66 = vmul.f32 %v65, %v65
  %v67 = vsel %vm64, %v63, %v66
  %v68 = vmul.f32 %v59, %v67
  %69 = vadd.xlane.f32.xlu0 %v68
  %v70 = vpop.xlane.xlu0 %69
  %v71 = vsel %vm40, %v70, 0.0
  %v72 = vrot.slane %v71, 4
  %v73 = vadd.f32 %v71, %v72
  %v74 = vrot.slane %v73, 2
  %v75 = vadd.f32 %v73, %v74
  %v76 = vrot.slane %v75, 1
  %v77 = vadd.f32 %v75, %v76
  %v78 = vsub.f32 0.0, %v77
  %v79 = vmul.f32 %v31, %v31
  %80 = vadd.xlane.f32.xlu0 %v35
  %v81 = vpop.xlane.xlu0 %80
  %v82 = vmul.f32 %v35, %v35
  %83 = vadd.xlane.f32.xlu0 %v82
  %v84 = vpop.xlane.xlu0 %83
  %v85 = vmul.f32 %v29, 2.0
  %v86 = vmul.f32 %v85, %v81
  %v87 = vsub.f32 %v84, %v86
  %v88 = vmul.f32 %v29, %v29
  %v89 = vmul.f32 %v88, 32.0
  %v90 = vadd.f32 %v87, %v89
  %v91 = vmul.f32 %v90, -0.5
  %v92 = vrcp.pop %v79
  %v93 = vmul.f32 %v91, %v92
  %v94 = vmul.f32 %v93, 1.442695
  %v95 = vpow.pop %v94
  %v96 = vmax.f32 %v95, 1.17549e-38
  %v97 = vmul.f32 %v60, %v96
  %98 = vadd.xlane.f32.xlu0 %v97
  %v99 = vpop.xlane.xlu0 %98
  %v100 = vmul.f32 %v46, %v96
  %101 = vadd.xlane.f32.xlu0 %v100
  %v102 = vpop.xlane.xlu0 %101
  %v103 = vrcp.pop %v102
  %v104 = vmul.f32 %v99, %v103
  %v105 = vmax.f32 %v104, 1e-07
  %v106 = vlog2.pop %v105
  %v107 = vmul.f32 %v106, 0.6931472
  %v108 = vsub.f32 0.0, %v107
  %v109 = vsel %vm40, %v108, 0.0
  %v110 = vrot.slane %v109, 4
  %v111 = vadd.f32 %v109, %v110
  %v112 = vrot.slane %v111, 2
  %v113 = vadd.f32 %v111, %v112
  %v114 = vrot.slane %v113, 1
  %v115 = vadd.f32 %v113, %v114
  %v116 = vmul.f32 %v31, 2.0
  %v117 = vld [vmem:[%s2] sm:$0xff]
  %v118 = vld [vmem:[%s3] sm:$0xff]
  %v119 = vld [vmem:[%s4] sm:$0xff]
  %v121 = vcombine.high %v79, %v79
  %v123 = vunpack.c.l.s4 1966171168
  %v124 = vunpack.c.0.s8 %v123
  %v125 = vlaneseq
  %v126 = vshrl.u32 %v125, 7
  %v127 = vsub.s32 %v124, %v126
  %v128 = vrot.slane %v79, %v127
  %v130 = vunpack.c.l.s4 1966171168
  %v131 = vunpack.c.0.s8 %v130
  %v132 = vlaneseq
  %v133 = vshrl.u32 %v132, 7
  %v134 = vsub.s32 %v131, %v133
  %v135 = vrot.slane %v121, %v134
  %v136 = vcombine.high %v128, %v128
  %v137 = vcombine.high %v135, %v135
  %v139 = vunpack.c.l.s4 1966171168
  %v140 = vunpack.c.0.s8 %v139
  %v141 = vlaneseq
  %v142 = vshrl.u32 %v141, 7
  %v143 = vsub.s32 %v140, %v142
  %v144 = vrot.slane %v128, %v143
  %v146 = vunpack.c.l.s4 1966171168
  %v147 = vunpack.c.0.s8 %v146
  %v148 = vlaneseq
  %v149 = vshrl.u32 %v148, 7
  %v150 = vsub.s32 %v147, %v149
  %v151 = vrot.slane %v135, %v150
  %v153 = vunpack.c.l.s4 1966171168
  %v154 = vunpack.c.0.s8 %v153
  %v155 = vlaneseq
  %v156 = vshrl.u32 %v155, 7
  %v157 = vsub.s32 %v154, %v156
  %v158 = vrot.slane %v136, %v157
  %v160 = vunpack.c.l.s4 1966171168
  %v161 = vunpack.c.0.s8 %v160
  %v162 = vlaneseq
  %v163 = vshrl.u32 %v162, 7
  %v164 = vsub.s32 %v161, %v163
  %v165 = vrot.slane %v137, %v164
  %v166 = vcombine.high %v144, %v144
  %v167 = vcombine.high %v151, %v151
  %v168 = vcombine.high %v158, %v158
  %v169 = vcombine.high %v165, %v165
  %v170 = vmul.f32 %v118, %v118
  %v171 = vlaneseq
  %v172 = vshrl.u32 %v171, 7
  %v173 = vsub.s32 0, %v172
  %v174 = vrot.slane %v144, %v173
  %v175 = vlaneseq
  %v176 = vshrl.u32 %v175, 7
  %v177 = vsub.s32 0, %v176
  %v178 = vrot.slane %v158, %v177
  %v179 = vlaneseq
  %v180 = vshrl.u32 %v179, 7
  %v181 = vsub.s32 0, %v180
  %v182 = vrot.slane %v166, %v181
  %v183 = vlaneseq
  %v184 = vshrl.u32 %v183, 7
  %v185 = vsub.s32 0, %v184
  %v186 = vrot.slane %v168, %v185
  %v187 = vlaneseq
  %v188 = vshrl.u32 %v187, 7
  %v189 = vsub.s32 0, %v188
  %v190 = vrot.slane %v151, %v189
  %v191 = vlaneseq
  %v192 = vshrl.u32 %v191, 7
  %v193 = vsub.s32 0, %v192
  %v194 = vrot.slane %v165, %v193
  %v195 = vlaneseq
  %v196 = vshrl.u32 %v195, 7
  %v197 = vsub.s32 0, %v196
  %v198 = vrot.slane %v167, %v197
  %v199 = vlaneseq
  %v200 = vshrl.u32 %v199, 7
  %v201 = vsub.s32 0, %v200
  %v202 = vrot.slane %v169, %v201
  %v211 = vadd.f32 %v174, %v170
  %v212 = vadd.f32 %v178, %v170
  %v213 = vadd.f32 %v182, %v170
  %v214 = vadd.f32 %v186, %v170
  %v215 = vadd.f32 %v190, %v170
  %v216 = vadd.f32 %v194, %v170
  %v217 = vadd.f32 %v198, %v170
  %v218 = vadd.f32 %v202, %v170
  %v219 = vrcp.pop %v211
  %v220 = vrcp.pop %v212
  %v221 = vrcp.pop %v213
  %v222 = vrcp.pop %v214
  %v223 = vrcp.pop %v215
  %v224 = vrcp.pop %v216
  %v225 = vrcp.pop %v217
  %v226 = vrcp.pop %v218
  %v228 = vcombine.high %v116, %v116
  %v230 = vunpack.c.l.s4 1966171168
  %v231 = vunpack.c.0.s8 %v230
  %v232 = vlaneseq
  %v233 = vshrl.u32 %v232, 7
  %v234 = vsub.s32 %v231, %v233
  %v235 = vrot.slane %v116, %v234
  %v237 = vunpack.c.l.s4 1966171168
  %v238 = vunpack.c.0.s8 %v237
  %v239 = vlaneseq
  %v240 = vshrl.u32 %v239, 7
  %v241 = vsub.s32 %v238, %v240
  %v242 = vrot.slane %v228, %v241
  %v243 = vcombine.high %v235, %v235
  %v244 = vcombine.high %v242, %v242
  %v246 = vunpack.c.l.s4 1966171168
  %v247 = vunpack.c.0.s8 %v246
  %v248 = vlaneseq
  %v249 = vshrl.u32 %v248, 7
  %v250 = vsub.s32 %v247, %v249
  %v251 = vrot.slane %v235, %v250
  %v253 = vunpack.c.l.s4 1966171168
  %v254 = vunpack.c.0.s8 %v253
  %v255 = vlaneseq
  %v256 = vshrl.u32 %v255, 7
  %v257 = vsub.s32 %v254, %v256
  %v258 = vrot.slane %v242, %v257
  %v260 = vunpack.c.l.s4 1966171168
  %v261 = vunpack.c.0.s8 %v260
  %v262 = vlaneseq
  %v263 = vshrl.u32 %v262, 7
  %v264 = vsub.s32 %v261, %v263
  %v265 = vrot.slane %v243, %v264
  %v267 = vunpack.c.l.s4 1966171168
  %v268 = vunpack.c.0.s8 %v267
  %v269 = vlaneseq
  %v270 = vshrl.u32 %v269, 7
  %v271 = vsub.s32 %v268, %v270
  %v272 = vrot.slane %v244, %v271
  %v273 = vcombine.high %v251, %v251
  %v274 = vcombine.high %v258, %v258
  %v275 = vcombine.high %v265, %v265
  %v276 = vcombine.high %v272, %v272
  %v277 = vlaneseq
  %v278 = vshrl.u32 %v277, 7
  %v279 = vsub.s32 0, %v278
  %v280 = vrot.slane %v251, %v279
  %v281 = vlaneseq
  %v282 = vshrl.u32 %v281, 7
  %v283 = vsub.s32 0, %v282
  %v284 = vrot.slane %v265, %v283
  %v285 = vlaneseq
  %v286 = vshrl.u32 %v285, 7
  %v287 = vsub.s32 0, %v286
  %v288 = vrot.slane %v273, %v287
  %v289 = vlaneseq
  %v290 = vshrl.u32 %v289, 7
  %v291 = vsub.s32 0, %v290
  %v292 = vrot.slane %v275, %v291
  %v293 = vlaneseq
  %v294 = vshrl.u32 %v293, 7
  %v295 = vsub.s32 0, %v294
  %v296 = vrot.slane %v258, %v295
  %v297 = vlaneseq
  %v298 = vshrl.u32 %v297, 7
  %v299 = vsub.s32 0, %v298
  %v300 = vrot.slane %v272, %v299
  %v301 = vlaneseq
  %v302 = vshrl.u32 %v301, 7
  %v303 = vsub.s32 0, %v302
  %v304 = vrot.slane %v274, %v303
  %v305 = vlaneseq
  %v306 = vshrl.u32 %v305, 7
  %v307 = vsub.s32 0, %v306
  %v308 = vrot.slane %v276, %v307
  %v317 = vmul.f32 %v280, %v118
  %v318 = vmul.f32 %v284, %v118
  %v319 = vmul.f32 %v288, %v118
  %v320 = vmul.f32 %v292, %v118
  %v321 = vmul.f32 %v296, %v118
  %v322 = vmul.f32 %v300, %v118
  %v323 = vmul.f32 %v304, %v118
  %v324 = vmul.f32 %v308, %v118
  %v325 = vmul.f32 %v317, %v219
  %v326 = vmul.f32 %v318, %v220
  %v327 = vmul.f32 %v319, %v221
  %v328 = vmul.f32 %v320, %v222
  %v329 = vmul.f32 %v321, %v223
  %v330 = vmul.f32 %v322, %v224
  %v331 = vmul.f32 %v323, %v225
  %v332 = vmul.f32 %v324, %v226
  %v333 = vmul.f32 %v325, %v325
  %v334 = vmul.f32 %v326, %v326
  %v335 = vmul.f32 %v327, %v327
  %v336 = vmul.f32 %v328, %v328
  %v337 = vmul.f32 %v329, %v329
  %v338 = vmul.f32 %v330, %v330
  %v339 = vmul.f32 %v331, %v331
  %v340 = vmul.f32 %v332, %v332
  %v341 = vmul.f32 %v333, %v333
  %v342 = vmul.f32 %v334, %v334
  %v343 = vmul.f32 %v335, %v335
  %v344 = vmul.f32 %v336, %v336
  %v345 = vmul.f32 %v337, %v337
  %v346 = vmul.f32 %v338, %v338
  %v347 = vmul.f32 %v339, %v339
  %v348 = vmul.f32 %v340, %v340
  %v349 = vmul.f32 %v341, %v341
  %v350 = vmul.f32 %v342, %v342
  %v351 = vmul.f32 %v343, %v343
  %v352 = vmul.f32 %v344, %v344
  %v353 = vmul.f32 %v345, %v345
  %v354 = vmul.f32 %v346, %v346
  %v355 = vmul.f32 %v347, %v347
  %v356 = vmul.f32 %v348, %v348
  %v357 = vmul.f32 %v349, %v349
  %v358 = vmul.f32 %v350, %v350
  %v359 = vmul.f32 %v351, %v351
  %v360 = vmul.f32 %v352, %v352
  %v361 = vmul.f32 %v353, %v353
  %v362 = vmul.f32 %v354, %v354
  %v363 = vmul.f32 %v355, %v355
  %v364 = vmul.f32 %v356, %v356
  %v366 = vcombine.high %v29, %v29
  %v368 = vunpack.c.l.s4 1966171168
  %v369 = vunpack.c.0.s8 %v368
  %v370 = vlaneseq
  %v371 = vshrl.u32 %v370, 7
  %v372 = vsub.s32 %v369, %v371
  %v373 = vrot.slane %v29, %v372
  %v375 = vunpack.c.l.s4 1966171168
  %v376 = vunpack.c.0.s8 %v375
  %v377 = vlaneseq
  %v378 = vshrl.u32 %v377, 7
  %v379 = vsub.s32 %v376, %v378
  %v380 = vrot.slane %v366, %v379
  %v381 = vcombine.high %v373, %v373
  %v382 = vcombine.high %v380, %v380
  %v384 = vunpack.c.l.s4 1966171168
  %v385 = vunpack.c.0.s8 %v384
  %v386 = vlaneseq
  %v387 = vshrl.u32 %v386, 7
  %v388 = vsub.s32 %v385, %v387
  %v389 = vrot.slane %v373, %v388
  %v391 = vunpack.c.l.s4 1966171168
  %v392 = vunpack.c.0.s8 %v391
  %v393 = vlaneseq
  %v394 = vshrl.u32 %v393, 7
  %v395 = vsub.s32 %v392, %v394
  %v396 = vrot.slane %v380, %v395
  %v398 = vunpack.c.l.s4 1966171168
  %v399 = vunpack.c.0.s8 %v398
  %v400 = vlaneseq
  %v401 = vshrl.u32 %v400, 7
  %v402 = vsub.s32 %v399, %v401
  %v403 = vrot.slane %v381, %v402
  %v405 = vunpack.c.l.s4 1966171168
  %v406 = vunpack.c.0.s8 %v405
  %v407 = vlaneseq
  %v408 = vshrl.u32 %v407, 7
  %v409 = vsub.s32 %v406, %v408
  %v410 = vrot.slane %v382, %v409
  %v411 = vcombine.high %v389, %v389
  %v412 = vcombine.high %v396, %v396
  %v413 = vcombine.high %v403, %v403
  %v414 = vcombine.high %v410, %v410
  %v415 = vlaneseq
  %v416 = vshrl.u32 %v415, 7
  %v417 = vsub.s32 0, %v416
  %v418 = vrot.slane %v389, %v417
  %v419 = vlaneseq
  %v420 = vshrl.u32 %v419, 7
  %v421 = vsub.s32 0, %v420
  %v422 = vrot.slane %v403, %v421
  %v423 = vlaneseq
  %v424 = vshrl.u32 %v423, 7
  %v425 = vsub.s32 0, %v424
  %v426 = vrot.slane %v411, %v425
  %v427 = vlaneseq
  %v428 = vshrl.u32 %v427, 7
  %v429 = vsub.s32 0, %v428
  %v430 = vrot.slane %v413, %v429
  %v431 = vlaneseq
  %v432 = vshrl.u32 %v431, 7
  %v433 = vsub.s32 0, %v432
  %v434 = vrot.slane %v396, %v433
  %v435 = vlaneseq
  %v436 = vshrl.u32 %v435, 7
  %v437 = vsub.s32 0, %v436
  %v438 = vrot.slane %v410, %v437
  %v439 = vlaneseq
  %v440 = vshrl.u32 %v439, 7
  %v441 = vsub.s32 0, %v440
  %v442 = vrot.slane %v412, %v441
  %v443 = vlaneseq
  %v444 = vshrl.u32 %v443, 7
  %v445 = vsub.s32 0, %v444
  %v446 = vrot.slane %v414, %v445
  %v455 = vsub.f32 %v418, %v117
  %v456 = vsub.f32 %v422, %v117
  %v457 = vsub.f32 %v426, %v117
  %v458 = vsub.f32 %v430, %v117
  %v459 = vsub.f32 %v434, %v117
  %v460 = vsub.f32 %v438, %v117
  %v461 = vsub.f32 %v442, %v117
  %v462 = vsub.f32 %v446, %v117
  %v463 = vmul.f32 %v455, %v455
  %v464 = vmul.f32 %v456, %v456
  %v465 = vmul.f32 %v457, %v457
  %v466 = vmul.f32 %v458, %v458
  %v467 = vmul.f32 %v459, %v459
  %v468 = vmul.f32 %v460, %v460
  %v469 = vmul.f32 %v461, %v461
  %v470 = vmul.f32 %v462, %v462
  %v471 = vmul.f32 %v463, 8.0
  %v472 = vmul.f32 %v464, 8.0
  %v473 = vmul.f32 %v465, 8.0
  %v474 = vmul.f32 %v466, 8.0
  %v475 = vmul.f32 %v467, 8.0
  %v476 = vmul.f32 %v468, 8.0
  %v477 = vmul.f32 %v469, 8.0
  %v478 = vmul.f32 %v470, 8.0
  %v479 = vmul.f32 %v471, %v219
  %v480 = vmul.f32 %v472, %v220
  %v481 = vmul.f32 %v473, %v221
  %v482 = vmul.f32 %v474, %v222
  %v483 = vmul.f32 %v475, %v223
  %v484 = vmul.f32 %v476, %v224
  %v485 = vmul.f32 %v477, %v225
  %v486 = vmul.f32 %v478, %v226
  %v487 = vsub.f32 0.0, %v479
  %v488 = vsub.f32 0.0, %v480
  %v489 = vsub.f32 0.0, %v481
  %v490 = vsub.f32 0.0, %v482
  %v491 = vsub.f32 0.0, %v483
  %v492 = vsub.f32 0.0, %v484
  %v493 = vsub.f32 0.0, %v485
  %v494 = vsub.f32 0.0, %v486
  %v495 = vmul.f32 %v487, 1.442695
  %v496 = vpow.pop %v495
  %v497 = vmul.f32 %v488, 1.442695
  %v498 = vpow.pop %v497
  %v499 = vmul.f32 %v489, 1.442695
  %v500 = vpow.pop %v499
  %v501 = vmul.f32 %v490, 1.442695
  %v502 = vpow.pop %v501
  %v503 = vmul.f32 %v491, 1.442695
  %v504 = vpow.pop %v503
  %v505 = vmul.f32 %v492, 1.442695
  %v506 = vpow.pop %v505
  %v507 = vmul.f32 %v493, 1.442695
  %v508 = vpow.pop %v507
  %v509 = vmul.f32 %v494, 1.442695
  %v510 = vpow.pop %v509
  %v511 = vmul.f32 %v357, %v496
  %v512 = vmul.f32 %v358, %v498
  %v513 = vmul.f32 %v359, %v500
  %v514 = vmul.f32 %v360, %v502
  %v515 = vmul.f32 %v361, %v504
  %v516 = vmul.f32 %v362, %v506
  %v517 = vmul.f32 %v363, %v508
  %v518 = vmul.f32 %v364, %v510
  %v519 = vmul.f32 %v511, 5.882353
  %v520 = vmul.f32 %v512, 5.882353
  %v521 = vmul.f32 %v513, 5.882353
  %v522 = vmul.f32 %v514, 5.882353
  %v523 = vmul.f32 %v515, 5.882353
  %v524 = vmul.f32 %v516, 5.882353
  %v525 = vmul.f32 %v517, 5.882353
  %v526 = vmul.f32 %v518, 5.882353
  %v527 = vmul.f32 %v519, 1.442695
  %v528 = vpow.pop %v527
  %v529 = vmul.f32 %v520, 1.442695
  %v530 = vpow.pop %v529
  %v531 = vmul.f32 %v521, 1.442695
  %v532 = vpow.pop %v531
  %v533 = vmul.f32 %v522, 1.442695
  %v534 = vpow.pop %v533
  %v535 = vmul.f32 %v523, 1.442695
  %v536 = vpow.pop %v535
  %v537 = vmul.f32 %v524, 1.442695
  %v538 = vpow.pop %v537
  %v539 = vmul.f32 %v525, 1.442695
  %v540 = vpow.pop %v539
  %v541 = vmul.f32 %v526, 1.442695
  %v542 = vpow.pop %v541
  %v543 = vlaneseq
  %v544 = vand.u32 %v543, 127
  %vm545 = vcmp.ne.s32.totalorder %v39, %v544
  %vm546 = vcmp.lt.s32.totalorder %v544, 4
  %vm547 = vmand %vm545, %vm546
  %v548 = vsel %vm547, 1, 0
  %v549 = vcvt.s32.f32 %v548
  %v550 = vlaneseq
  %v551 = vshrl.u32 %v550, 7
  %v552 = vsub.s32 0, %v551
  %v553 = vrot.slane %v549, %v552
  %555 = vbcast.lane.b32.xlu0 %v553, 256
  %v556 = vpop.permute.xlu0 %555
  %v557 = vlaneseq
  %v558 = vshrl.u32 %v557, 7
  %v559 = vsub.s32 1, %v558
  %v560 = vrot.slane %v549, %v559
  %562 = vbcast.lane.b32.xlu0 %v560, 256
  %v563 = vpop.permute.xlu0 %562
  %v564 = vlaneseq
  %v565 = vshrl.u32 %v564, 7
  %v566 = vsub.s32 2, %v565
  %v567 = vrot.slane %v549, %v566
  %569 = vbcast.lane.b32.xlu0 %v567, 256
  %v570 = vpop.permute.xlu0 %569
  %v571 = vlaneseq
  %v572 = vshrl.u32 %v571, 7
  %v573 = vsub.s32 3, %v572
  %v574 = vrot.slane %v549, %v573
  %576 = vbcast.lane.b32.xlu0 %v574, 256
  %v577 = vpop.permute.xlu0 %576
  %v578 = vlaneseq
  %v579 = vshrl.u32 %v578, 7
  %v580 = vsub.s32 4, %v579
  %v581 = vrot.slane %v549, %v580
  %583 = vbcast.lane.b32.xlu0 %v581, 256
  %v584 = vpop.permute.xlu0 %583
  %v585 = vlaneseq
  %v586 = vshrl.u32 %v585, 7
  %v587 = vsub.s32 5, %v586
  %v588 = vrot.slane %v549, %v587
  %590 = vbcast.lane.b32.xlu0 %v588, 256
  %v591 = vpop.permute.xlu0 %590
  %v592 = vlaneseq
  %v593 = vshrl.u32 %v592, 7
  %v594 = vsub.s32 6, %v593
  %v595 = vrot.slane %v549, %v594
  %597 = vbcast.lane.b32.xlu0 %v595, 256
  %v598 = vpop.permute.xlu0 %597
  %v599 = vlaneseq
  %v600 = vshrl.u32 %v599, 7
  %v601 = vsub.s32 7, %v600
  %v602 = vrot.slane %v549, %v601
  %604 = vbcast.lane.b32.xlu0 %v602, 256
  %v605 = vpop.permute.xlu0 %604
  %v607 = vcombine.high %v33, %v33
  %v609 = vunpack.c.l.s4 1966171168
  %v610 = vunpack.c.0.s8 %v609
  %v611 = vlaneseq
  %v612 = vshrl.u32 %v611, 7
  %v613 = vsub.s32 %v610, %v612
  %v614 = vrot.slane %v33, %v613
  %v616 = vunpack.c.l.s4 1966171168
  %v617 = vunpack.c.0.s8 %v616
  %v618 = vlaneseq
  %v619 = vshrl.u32 %v618, 7
  %v620 = vsub.s32 %v617, %v619
  %v621 = vrot.slane %v607, %v620
  %v622 = vcombine.high %v614, %v614
  %v623 = vcombine.high %v621, %v621
  %v625 = vunpack.c.l.s4 1966171168
  %v626 = vunpack.c.0.s8 %v625
  %v627 = vlaneseq
  %v628 = vshrl.u32 %v627, 7
  %v629 = vsub.s32 %v626, %v628
  %v630 = vrot.slane %v614, %v629
  %v632 = vunpack.c.l.s4 1966171168
  %v633 = vunpack.c.0.s8 %v632
  %v634 = vlaneseq
  %v635 = vshrl.u32 %v634, 7
  %v636 = vsub.s32 %v633, %v635
  %v637 = vrot.slane %v621, %v636
  %v639 = vunpack.c.l.s4 1966171168
  %v640 = vunpack.c.0.s8 %v639
  %v641 = vlaneseq
  %v642 = vshrl.u32 %v641, 7
  %v643 = vsub.s32 %v640, %v642
  %v644 = vrot.slane %v622, %v643
  %v646 = vunpack.c.l.s4 1966171168
  %v647 = vunpack.c.0.s8 %v646
  %v648 = vlaneseq
  %v649 = vshrl.u32 %v648, 7
  %v650 = vsub.s32 %v647, %v649
  %v651 = vrot.slane %v623, %v650
  %v652 = vcombine.high %v630, %v630
  %v653 = vcombine.high %v637, %v637
  %v654 = vcombine.high %v644, %v644
  %v655 = vcombine.high %v651, %v651
  %v656 = vlaneseq
  %v657 = vshrl.u32 %v656, 7
  %v658 = vsub.s32 0, %v657
  %v659 = vrot.slane %v630, %v658
  %v660 = vlaneseq
  %v661 = vshrl.u32 %v660, 7
  %v662 = vsub.s32 0, %v661
  %v663 = vrot.slane %v644, %v662
  %v664 = vlaneseq
  %v665 = vshrl.u32 %v664, 7
  %v666 = vsub.s32 0, %v665
  %v667 = vrot.slane %v652, %v666
  %v668 = vlaneseq
  %v669 = vshrl.u32 %v668, 7
  %v670 = vsub.s32 0, %v669
  %v671 = vrot.slane %v654, %v670
  %v672 = vlaneseq
  %v673 = vshrl.u32 %v672, 7
  %v674 = vsub.s32 0, %v673
  %v675 = vrot.slane %v637, %v674
  %v676 = vlaneseq
  %v677 = vshrl.u32 %v676, 7
  %v678 = vsub.s32 0, %v677
  %v679 = vrot.slane %v651, %v678
  %v680 = vlaneseq
  %v681 = vshrl.u32 %v680, 7
  %v682 = vsub.s32 0, %v681
  %v683 = vrot.slane %v653, %v682
  %v684 = vlaneseq
  %v685 = vshrl.u32 %v684, 7
  %v686 = vsub.s32 0, %v685
  %v687 = vrot.slane %v655, %v686
  %v696 = vmul.f32 %v659, %v119
  %v697 = vmul.f32 %v663, %v119
  %v698 = vmul.f32 %v667, %v119
  %v699 = vmul.f32 %v671, %v119
  %v700 = vmul.f32 %v675, %v119
  %v701 = vmul.f32 %v679, %v119
  %v702 = vmul.f32 %v683, %v119
  %v703 = vmul.f32 %v687, %v119
  %v704 = vmul.f32 %v696, %v556
  %v705 = vmul.f32 %v697, %v563
  %v706 = vmul.f32 %v698, %v570
  %v707 = vmul.f32 %v699, %v577
  %v708 = vmul.f32 %v700, %v584
  %v709 = vmul.f32 %v701, %v591
  %v710 = vmul.f32 %v702, %v598
  %v711 = vmul.f32 %v703, %v605
  %v712 = vmul.f32 %v528, %v556
  %v713 = vmul.f32 %v530, %v563
  %v714 = vmul.f32 %v532, %v570
  %v715 = vmul.f32 %v534, %v577
  %v716 = vmul.f32 %v536, %v584
  %v717 = vmul.f32 %v538, %v591
  %v718 = vmul.f32 %v540, %v598
  %v719 = vmul.f32 %v542, %v605
  %v720 = vrot.slane %v712, 4
  %v721 = vadd.f32 %v712, %v720
  %v722 = vrot.slane %v721, 2
  %v723 = vadd.f32 %v721, %v722
  %v724 = vrot.slane %v723, 1
  %v725 = vadd.f32 %v723, %v724
  %v726 = vrot.slane %v713, 4
  %v727 = vadd.f32 %v713, %v726
  %v728 = vrot.slane %v727, 2
  %v729 = vadd.f32 %v727, %v728
  %v730 = vrot.slane %v729, 1
  %v731 = vadd.f32 %v729, %v730
  %v732 = vrot.slane %v714, 4
  %v733 = vadd.f32 %v714, %v732
  %v734 = vrot.slane %v733, 2
  %v735 = vadd.f32 %v733, %v734
  %v736 = vrot.slane %v735, 1
  %v737 = vadd.f32 %v735, %v736
  %v738 = vrot.slane %v715, 4
  %v739 = vadd.f32 %v715, %v738
  %v740 = vrot.slane %v739, 2
  %v741 = vadd.f32 %v739, %v740
  %v742 = vrot.slane %v741, 1
  %v743 = vadd.f32 %v741, %v742
  %v744 = vrot.slane %v716, 4
  %v745 = vadd.f32 %v716, %v744
  %v746 = vrot.slane %v745, 2
  %v747 = vadd.f32 %v745, %v746
  %v748 = vrot.slane %v747, 1
  %v749 = vadd.f32 %v747, %v748
  %v750 = vrot.slane %v717, 4
  %v751 = vadd.f32 %v717, %v750
  %v752 = vrot.slane %v751, 2
  %v753 = vadd.f32 %v751, %v752
  %v754 = vrot.slane %v753, 1
  %v755 = vadd.f32 %v753, %v754
  %v756 = vrot.slane %v718, 4
  %v757 = vadd.f32 %v718, %v756
  %v758 = vrot.slane %v757, 2
  %v759 = vadd.f32 %v757, %v758
  %v760 = vrot.slane %v759, 1
  %v761 = vadd.f32 %v759, %v760
  %v762 = vrot.slane %v719, 4
  %v763 = vadd.f32 %v719, %v762
  %v764 = vrot.slane %v763, 2
  %v765 = vadd.f32 %v763, %v764
  %v766 = vrot.slane %v765, 1
  %v767 = vadd.f32 %v765, %v766
  %v768 = vadd.f32 %v725, 0.0
  %v769 = vadd.f32 %v731, 0.0
  %v770 = vadd.f32 %v737, 0.0
  %v771 = vadd.f32 %v743, 0.0
  %v772 = vadd.f32 %v749, 0.0
  %v773 = vadd.f32 %v755, 0.0
  %v774 = vadd.f32 %v761, 0.0
  %v775 = vadd.f32 %v767, 0.0
  %v776 = vmul.f32 %v511, %v704
  %v777 = vmul.f32 %v512, %v705
  %v778 = vmul.f32 %v513, %v706
  %v779 = vmul.f32 %v514, %v707
  %v780 = vmul.f32 %v515, %v708
  %v781 = vmul.f32 %v516, %v709
  %v782 = vmul.f32 %v517, %v710
  %v783 = vmul.f32 %v518, %v711
  %784 = vadd.xlane.f32.xlu0 %v776
  %v785 = vpop.xlane.xlu0 %784
  %786 = vadd.xlane.f32.xlu0 %v777
  %v787 = vpop.xlane.xlu0 %786
  %788 = vadd.xlane.f32.xlu0 %v778
  %v789 = vpop.xlane.xlu0 %788
  %790 = vadd.xlane.f32.xlu0 %v779
  %v791 = vpop.xlane.xlu0 %790
  %792 = vadd.xlane.f32.xlu0 %v780
  %v793 = vpop.xlane.xlu0 %792
  %794 = vadd.xlane.f32.xlu0 %v781
  %v795 = vpop.xlane.xlu0 %794
  %796 = vadd.xlane.f32.xlu0 %v782
  %v797 = vpop.xlane.xlu0 %796
  %798 = vadd.xlane.f32.xlu0 %v783
  %v799 = vpop.xlane.xlu0 %798
  %v808 = vlaneseq
  %v809 = vshrl.u32 %v808, 7
  %v810 = vsub.s32 %v544, %v809
  %v811 = vrot.slane %v785, %v810
  %v812 = vlaneseq
  %v813 = vshrl.u32 %v812, 7
  %v814 = vsub.s32 %v544, %v813
  %v815 = vrot.slane %v787, %v814
  %v816 = vlaneseq
  %v817 = vshrl.u32 %v816, 7
  %v818 = vsub.s32 %v544, %v817
  %v819 = vrot.slane %v789, %v818
  %v820 = vlaneseq
  %v821 = vshrl.u32 %v820, 7
  %v822 = vsub.s32 %v544, %v821
  %v823 = vrot.slane %v791, %v822
  %v824 = vlaneseq
  %v825 = vshrl.u32 %v824, 7
  %v826 = vsub.s32 %v544, %v825
  %v827 = vrot.slane %v793, %v826
  %v828 = vlaneseq
  %v829 = vshrl.u32 %v828, 7
  %v830 = vsub.s32 %v544, %v829
  %v831 = vrot.slane %v795, %v830
  %v832 = vlaneseq
  %v833 = vshrl.u32 %v832, 7
  %v834 = vsub.s32 %v544, %v833
  %v835 = vrot.slane %v797, %v834
  %v836 = vlaneseq
  %v837 = vshrl.u32 %v836, 7
  %v838 = vsub.s32 %v544, %v837
  %v839 = vrot.slane %v799, %v838
  %vm840 = vcmask 1041409
  %v841 = vsel %vm840, %v815, %v811
  %vm842 = vcmask 1042434
  %v843 = vsel %vm842, %v819, %v841
  %vm844 = vcmask 1043459
  %v845 = vsel %vm844, %v823, %v843
  %vm846 = vcmask 1044484
  %v847 = vsel %vm846, %v827, %v845
  %vm848 = vcmask 1045509
  %v849 = vsel %vm848, %v831, %v847
  %vm850 = vcmask 1046534
  %v851 = vsel %vm850, %v835, %v849
  %vm852 = vcmask 1047559
  %v853 = vsel %vm852, %v839, %v851
  %vm855 = vcmask 64512
  %v856 = vsel %vm855, %v853, 0.0
  %857 = vadd.xlane.f32.xlu0 %v856
  %v858 = vpop.xlane.xlu0 %857
  %v859 = vadd.f32 %v858, 0.0
  %v860 = vpack.c.bf16 %v33, %v33
  %v861 = vpack.c.bf16 %v119, %v119
  %862 = vmatprep.subr.bf16.mxu0 0
  %863 = vmatpush1.bf16.xpose.msra.mxu0 %v861
  %864 = vmatprep.subr.bf16.mxu0 0
  %865 = vmatpush1.bf16.xpose.msra.mxu0 0
  %866 = vmatprep.subr.bf16.mxu0 0
  %867 = vmatpush1.bf16.xpose.msra.mxu0 0
  %868 = vmatprep.subr.bf16.mxu0 0
  %869 = vmatpush1.bf16.xpose.msra.mxu0 0
  %870 = vmatprep.subr.bf16.mxu0 0
  %871 = vmatpush1.bf16.xpose.msra.mxu0 0
  %872 = vmatprep.subr.bf16.mxu0 0
  %873 = vmatpush1.bf16.xpose.msra.mxu0 0
  %874 = vmatprep.subr.bf16.mxu0 0
  %875 = vmatpush1.bf16.xpose.msra.mxu0 0
  %876 = vmatprep.subr.bf16.mxu0 0
  %877 = vmatpush1.bf16.xpose.msra.mxu0 0
  %878 = vmatprep.subr.bf16.mxu0 0
  %879 = vmatpush1.bf16.xpose.msra.mxu0 0
  %880 = vmatprep.subr.bf16.mxu0 0
  %881 = vmatpush1.bf16.xpose.msra.mxu0 0
  %882 = vmatprep.subr.bf16.mxu0 0
  %883 = vmatpush1.bf16.xpose.msra.mxu0 0
  %884 = vmatprep.subr.bf16.mxu0 0
  %885 = vmatpush1.bf16.xpose.msra.mxu0 0
  %886 = vmatprep.subr.bf16.mxu0 0
  %887 = vmatpush1.bf16.xpose.msra.mxu0 0
  %888 = vmatprep.subr.bf16.mxu0 0
  %889 = vmatpush1.bf16.xpose.msra.mxu0 0
  %890 = vmatprep.subr.bf16.mxu0 0
  %891 = vmatpush1.bf16.xpose.msra.mxu0 0
  %892 = vmatprep.subr.bf16.mxu0 0
  %893 = vmatpush1.bf16.xpose.msra.mxu0 0
  %894 = vmatprep.mubr.bf16.mxu0 0
  %895 = vmatmul.mubr.bf16.gmra.mrb[0].mxu0 %v860
  %v896 = vpop.f32.mrb[0].mxu0
  %v897 = vadd.f32 0.0, %v896
  %v898 = vpop.f32.mrb[0].mxu0
  %v899 = vpop.f32.mrb[0].mxu0
  %v900 = vpop.f32.mrb[0].mxu0
  %901 = vdwg.mxu0
  %vm902 = vcmp.gt.f32.partialorder %v897, 0.5
  %vm903 = vmand %vm545, %vm902
  %904 = vadd.xlane.f32.xlu0 %v33
  %v905 = vpop.xlane.xlu0 %904
  %v906 = vld [vmem:[%s6] sm:$0x1]
  %v908 = vlaneseq
  %v909 = vshrl.u32 %v908, 7
  %v910 = vsub.s32 0, %v909
  %v911 = vrot.slane %v906, %v910
  %v913 = vadd.f32 %v905, %v911
  %v914 = vsub.f32 %v913, %v897
  %v915 = vmax.f32 %v914, 1.0
  %v916 = vrcp.pop %v915
  %v917 = vmul.f32 %v897, %v916
  %v918 = vsel %vm903, %v917, 1.0
  %v919 = vlog2.pop %v918
  %v920 = vmul.f32 %v919, 0.6931472
  %v921 = vsel %vm903, %v920, 0.0
  %v922 = vmul.f32 %v897, %v921
  %v923 = vsel %vm855, %v922, 0.0
  %924 = vadd.xlane.f32.xlu0 %v923
  %v925 = vpop.xlane.xlu0 %924
  %v926 = vsel %vm903, 1, 0
  %v927 = vcvt.s32.f32 %v926
  %v928 = vsel %vm855, %v927, 0.0
  %929 = vadd.xlane.f32.xlu0 %v928
  %v930 = vpop.xlane.xlu0 %929
  %v931 = vld [vmem:[%s5] sm:$0x1]
  %v933 = vlaneseq
  %v934 = vshrl.u32 %v933, 7
  %v935 = vsub.s32 0, %v934
  %v936 = vrot.slane %v931, %v935
  %v938 = vsub.f32 %v936, %v33
  %v939 = vmul.f32 %v33, %v938
  %v940 = vmax.f32 %v768, 1.17549e-38
  %v941 = vmax.f32 %v769, 1.17549e-38
  %v942 = vmax.f32 %v770, 1.17549e-38
  %v943 = vmax.f32 %v771, 1.17549e-38
  %v944 = vmax.f32 %v772, 1.17549e-38
  %v945 = vmax.f32 %v773, 1.17549e-38
  %v946 = vmax.f32 %v774, 1.17549e-38
  %v947 = vmax.f32 %v775, 1.17549e-38
  %v948 = vlog2.pop %v940
  %v949 = vmul.f32 %v948, 0.6931472
  %v950 = vlog2.pop %v941
  %v951 = vmul.f32 %v950, 0.6931472
  %v952 = vlog2.pop %v942
  %v953 = vmul.f32 %v952, 0.6931472
  %v954 = vlog2.pop %v943
  %v955 = vmul.f32 %v954, 0.6931472
  %v956 = vlog2.pop %v944
  %v957 = vmul.f32 %v956, 0.6931472
  %v958 = vlog2.pop %v945
  %v959 = vmul.f32 %v958, 0.6931472
  %v960 = vlog2.pop %v946
  %v961 = vmul.f32 %v960, 0.6931472
  %v962 = vlog2.pop %v947
  %v963 = vmul.f32 %v962, 0.6931472
  %v964 = vmul.f32 %v859, 5.882353
  %v973 = vsel %vm840, %v951, %v949
  %v974 = vsel %vm842, %v953, %v973
  %v975 = vsel %vm844, %v955, %v974
  %v976 = vsel %vm846, %v957, %v975
  %v977 = vsel %vm848, %v959, %v976
  %v978 = vsel %vm850, %v961, %v977
  %v979 = vsel %vm852, %v963, %v978
  %v981 = vmul.f32 %v939, %v979
  %982 = vadd.xlane.f32.xlu0 %v981
  %v983 = vpop.xlane.xlu0 %982
  %v984 = vsub.f32 %v964, %v983
  %v985 = vadd.f32 %v984, %v925
  %vm986 = vcmp.gt.f32.partialorder %v930, 0.0
  %v987 = vsub.f32 0.0, %v985
  %v988 = vsel %vm986, %v930, 1.0
  %v989 = vrcp.pop %v988
  %v990 = vmul.f32 %v987, %v989
  %v991 = vsel %vm986, %v990, 0.0
  %v992 = vrot.slane %v991, 4
  %v993 = vadd.f32 %v991, %v992
  %v994 = vrot.slane %v993, 2
  %v995 = vadd.f32 %v993, %v994
  %v996 = vrot.slane %v995, 1
  %v997 = vadd.f32 %v995, %v996
  %vm998 = vcmp.eq.s32.totalorder %v37, 0
  %vm999 = vcmp.eq.s32.totalorder %v544, 0
  %vm1000 = vmand %vm998, %vm999
  %v1001 = vsel %vm1000, %v78, 0.0
  %vm1002 = vcmp.eq.s32.totalorder %v544, 1
  %vm1003 = vmand %vm998, %vm1002
  %v1004 = vsel %vm1003, %v115, 0.0
  %v1005 = vadd.f32 %v1001, %v1004
  %vm1006 = vcmp.eq.s32.totalorder %v544, 2
  %vm1007 = vmand %vm998, %vm1006
  %v1008 = vsel %vm1007, %v997, 0.0
  %v1009 = vadd.f32 %v1005, %v1008
  %1010 = vst [vmem:[%s7] sm:$0xff] %v1009
  // Predicated region
  $region30: #{kmcl_loss.1} parent=0 // pred_check
    _
  $region31: #{kmcl_loss.1} parent=0 // pred_check_branch
    %1012 = sbr.rel (0) target = $region33
  $region32: #{kmcl_loss.1} parent=0 // pred_region
    _
  $region33: #{kmcl_loss.1} parent=0 // pred_fallthru
    _
  // Predicated region
  $region34: #{kmcl_loss.1} parent=0 // pred_check
    _
  $region35: #{kmcl_loss.1} parent=0 // pred_check_branch
    %1014 = sbr.rel (0) target = $region37
  $region36: #{kmcl_loss.1} parent=0 // pred_region
    _
  $region37: #{kmcl_loss.1} parent=0 // pred_fallthru
    _

</llo_original>
